<compile_context>
chip_gen: v5e
topology: v5e:2x2
jax: 0.10.0
libtpu: 0.0.40
codegen_flags: <defaults>
</compile_context>

<pallas_src>
import functools
import math

import jax
import jax.numpy as jnp
from jax import lax
from jax.experimental import pallas as pl
from jax.experimental.pallas import tpu as pltpu

LN_EPS = 1e-5
_LANE = 128


def _act(x, name):
    if name == "ReLU":
        return jnp.maximum(x, 0.0)
    if name == "erf":
        return lax.erf(x)
    if name == "GELU":  # exact (erf-based) GELU, matching nn.GELU() default
        return 0.5 * x * (1.0 + lax.erf(x * (1.0 / math.sqrt(2.0))))
    if name == "Linear":
        return x
    raise ValueError(f"unsupported activation: {name}")


def _round_up(n, m):
    return ((n + m - 1) // m) * m


# ---------------- fused Pallas kernel (entire stack in one body) ----------------

def fused_resln_kernel(x_ref, w0_ref, b0_ref, g_ref, beta_ref, ws_ref, bs_ref,
                       wl_ref, bl_ref, o_ref, *, mu, act_name, n_hidden):
    mm_dtype = w0_ref.dtype  # f32 or bf16 MXU operands; accumulation is always f32

    # first Standard_Linear
    x = x_ref[...].astype(mm_dtype)
    h = jnp.dot(x, w0_ref[...], preferred_element_type=jnp.float32)
    h = h + b0_ref[...].astype(jnp.float32)

    inv_d = 1.0 / h.shape[-1]
    # ResLN blocks -- static (unrolled) layer loop, statically indexed weights.
    for i in range(n_hidden):
        # one-pass LN stats: var = E[x^2] - mean^2
        s = jnp.sum(h, axis=-1, keepdims=True)
        ss = jnp.sum(h * h, axis=-1, keepdims=True)
        mean = s * inv_d
        var = ss * inv_d - mean * mean
        xn = (h - mean) * lax.rsqrt(var + LN_EPS)
        xn = xn * g_ref[i].astype(jnp.float32) + beta_ref[i].astype(jnp.float32)
        a = _act(xn, act_name)
        h = (mu * h
             + jnp.dot(a.astype(mm_dtype), ws_ref[i],
                       preferred_element_type=jnp.float32)
             + bs_ref[i].astype(jnp.float32))

    # final act + Standard_Linear (lane-dense, zero-padded output width)
    a = _act(h, act_name)
    y = jnp.dot(a.astype(mm_dtype), wl_ref[...], preferred_element_type=jnp.float32)
    o_ref[...] = (y + bl_ref[...].astype(jnp.float32)).astype(o_ref.dtype)


# ---------------- parameter init (matches module shapes / init scheme) ----------------

def init_params(key, in_size, h_size, out_size, n_hidden, sigma_w, sigma_b):
    keys = iter(jax.random.split(key, 2 * (n_hidden + 2)))

    def lin(fan_in, fan_out, std_w, std_b):
        kw, kb = next(keys), next(keys)
        w = (std_w / math.sqrt(fan_in)) * jax.random.normal(kw, (fan_in, fan_out), jnp.float32)
        b = std_b * jax.random.normal(kb, (1, fan_out), jnp.float32)
        return w, b

    first = lin(in_size, h_size, 1.0, sigma_b)          # Standard_Linear(in, h, std_w=1.0)
    blocks = []
    for _ in range(n_hidden):
        w, b = lin(h_size, h_size, sigma_w, sigma_b)    # ResLNBlock fc
        gamma = jnp.ones((1, h_size), jnp.float32)      # LayerNorm affine defaults
        beta = jnp.zeros((1, h_size), jnp.float32)
        blocks.append((gamma, beta, w, b))
    last = lin(h_size, out_size, sigma_w, sigma_b)      # Standard_Linear(h, out)
    return {"first": first, "blocks": blocks, "last": last}


def pack_params(params, *, weights_dtype=jnp.float32):
    """Stack block params and zero-pad the last layer to a lane-dense width."""
    w0, b0 = params["first"]
    h = w0.shape[1]
    blocks = params["blocks"]
    if blocks:
        gammas = jnp.stack([g for (g, _, _, _) in blocks])   # (L, 1, h)
        betas = jnp.stack([bt for (_, bt, _, _) in blocks])  # (L, 1, h)
        ws = jnp.stack([w for (_, _, w, _) in blocks])       # (L, h, h)
        bs = jnp.stack([b for (_, _, _, b) in blocks])       # (L, 1, h)
    else:  # dummies, never read: the in-kernel layer loop has zero iterations
        gammas = jnp.ones((1, 1, h), jnp.float32)
        betas = jnp.zeros((1, 1, h), jnp.float32)
        ws = jnp.zeros((1, h, h), jnp.float32)
        bs = jnp.zeros((1, 1, h), jnp.float32)
    wl, bl = params["last"]
    out_size = wl.shape[1]
    out_pad = _round_up(out_size, _LANE)                      # lane-dense store
    wl_p = jnp.pad(wl, ((0, 0), (0, out_pad - out_size)))
    bl_p = jnp.pad(bl, ((0, 0), (0, out_pad - out_size)))
    wd = weights_dtype
    return dict(
        w0=w0.astype(wd), b0=b0,
        gammas=gammas, betas=betas, ws=ws.astype(wd), bs=bs,
        wl=wl_p.astype(wd), bl=bl_p,
        n_hidden=len(blocks), out_size=out_size, out_pad=out_pad,
        h=h, in_size=w0.shape[0],
    )


# ---------------- forward (single fused pallas_call) ----------------

def res_ln_fcc_forward(x, packed, *, act_name, mu, block_n=256):
    N = x.shape[0]
    x2 = x.reshape(N, -1).astype(jnp.float32)                 # flatten
    h, in_size = packed["h"], packed["in_size"]
    out_pad, out_size = packed["out_pad"], packed["out_size"]
    n_hidden = packed["n_hidden"]

    kernel = functools.partial(fused_resln_kernel, mu=mu, act_name=act_name,
                               n_hidden=n_hidden)
    args = (x2, packed["w0"], packed["b0"], packed["gammas"], packed["betas"],
            packed["ws"], packed["bs"], packed["wl"], packed["bl"])

    wbytes = sum(int(a.size) * a.dtype.itemsize for a in args[1:])
    flops = 2 * N * (in_size * h + n_hidden * h * h + h * out_pad)
    transc = N * h * (n_hidden + 1) if act_name in ("erf", "GELU") else 0
    cost = pl.CostEstimate(
        flops=int(flops), transcendentals=int(transc),
        bytes_accessed=int(wbytes + x2.size * 4 + N * out_pad * 4))

    if N <= block_n:
        # Tiny batch: one gridless call, everything resident in VMEM.
        out = pl.pallas_call(
            kernel,
            out_shape=jax.ShapeDtypeStruct((N, out_pad), jnp.float32),
            in_specs=[pl.BlockSpec(memory_space=pltpu.MemorySpace.VMEM)] * len(args),
            out_specs=pl.BlockSpec(memory_space=pltpu.MemorySpace.VMEM),
            compiler_params=pltpu.CompilerParams(vmem_limit_bytes=48 * 1024 * 1024),
            cost_estimate=cost,
        )(*args)
    else:
        # Larger batch: tile rows over a parallel grid axis; weights stay
        # resident across steps (constant block index).
        n_pad = _round_up(N, block_n)
        xp = jnp.pad(x2, ((0, n_pad - N), (0, 0)))
        L = packed["ws"].shape[0]
        out = pl.pallas_call(
            kernel,
            out_shape=jax.ShapeDtypeStruct((n_pad, out_pad), jnp.float32),
            grid=(n_pad // block_n,),
            in_specs=[
                pl.BlockSpec((block_n, in_size), lambda i: (i, 0)),
                pl.BlockSpec((in_size, h), lambda i: (0, 0)),
                pl.BlockSpec((1, h), lambda i: (0, 0)),
                pl.BlockSpec((L, 1, h), lambda i: (0, 0, 0)),
                pl.BlockSpec((L, 1, h), lambda i: (0, 0, 0)),
                pl.BlockSpec((L, h, h), lambda i: (0, 0, 0)),
                pl.BlockSpec((L, 1, h), lambda i: (0, 0, 0)),
                pl.BlockSpec((h, out_pad), lambda i: (0, 0)),
                pl.BlockSpec((1, out_pad), lambda i: (0, 0)),
            ],
            out_specs=pl.BlockSpec((block_n, out_pad), lambda i: (i, 0)),
            compiler_params=pltpu.CompilerParams(
                dimension_semantics=("parallel",),
                vmem_limit_bytes=48 * 1024 * 1024),
            cost_estimate=cost,
        )(xp, *args[1:])
        out = out[:N]
    return out[:, :out_size]


# ---------------- pure-JAX reference (for validation) ----------------

def res_ln_fcc_reference(x, params, *, act_name, mu):
    N = x.shape[0]
    x = x.reshape(N, -1).astype(jnp.float32)
    w0, b0 = params["first"]
    x = x @ w0 + b0
    for (g, beta, w, b) in params["blocks"]:
        mean = jnp.mean(x, axis=-1, keepdims=True)
        var = jnp.mean(jnp.square(x - mean), axis=-1, keepdims=True)
        xn = (x - mean) * lax.rsqrt(var + LN_EPS) * g + beta
        x = mu * x + _act(xn, act_name) @ w + b
    wl, bl = params["last"]
    return _act(x, act_name) @ wl + bl


# ---------------- main ----------------

if __name__ == "__main__":
    in_size = 4 * 16 * 16   # flattened (C,H,W) = (4,16,16)
    h_size = 128
    out_size = 16
    n_hidden = 3
    sigma_w = 1.3
    sigma_b = 0.05
    act_name = "GELU"
    mu = 1.0

    key = jax.random.PRNGKey(0)
    kx, kp = jax.random.split(key)
    x = jax.random.normal(kx, (2, 4, 16, 16), jnp.float32)   # NCHW input, N=2

    params = init_params(kp, in_size, h_size, out_size, n_hidden, sigma_w, sigma_b)
    ref = jax.block_until_ready(res_ln_fcc_reference(x, params, act_name=act_name, mu=mu))

    # f32 path: matches PyTorch semantics.
    packed_f32 = pack_params(params, weights_dtype=jnp.float32)
    out = jax.block_until_ready(
        res_ln_fcc_forward(x, packed_f32, act_name=act_name, mu=mu))
    assert out.shape == (2, out_size), out.shape
    err = float(jnp.max(jnp.abs(out - ref)))
    assert jnp.allclose(out, ref, atol=1e-3, rtol=1e-3), err

    # bf16-weight path (perf option): bf16 MXU operands, f32 accumulation.
    packed_bf16 = pack_params(params, weights_dtype=jnp.bfloat16)
    out_bf16 = jax.block_until_ready(
        res_ln_fcc_forward(x, packed_bf16, act_name=act_name, mu=mu))
    assert out_bf16.shape == (2, out_size)
    assert bool(jnp.all(jnp.isfinite(out_bf16)))
    assert jnp.allclose(out_bf16, ref, atol=0.5, rtol=0.1), \
        float(jnp.max(jnp.abs(out_bf16 - ref)))

    print("KERNEL_OK")
</pallas_src>

<mosaic_0001>
module attributes {stable_mosaic.version = 11 : i64} {
  func.func @fused_resln_kernel(%arg0: memref<2x1024xf32, #tpu.memory_space<vmem>>, %arg1: memref<1024x128xf32, #tpu.memory_space<vmem>>, %arg2: memref<1x128xf32, #tpu.memory_space<vmem>>, %arg3: memref<3x1x128xf32, #tpu.memory_space<vmem>>, %arg4: memref<3x1x128xf32, #tpu.memory_space<vmem>>, %arg5: memref<3x128x128xf32, #tpu.memory_space<vmem>>, %arg6: memref<3x1x128xf32, #tpu.memory_space<vmem>>, %arg7: memref<128x128xf32, #tpu.memory_space<vmem>>, %arg8: memref<1x128xf32, #tpu.memory_space<vmem>>, %arg9: memref<2x128xf32, #tpu.memory_space<vmem>>) attributes {dimension_semantics = [], scalar_prefetch = 0 : i64, scratch_operands = 0 : i64, tpu.core_type = #tpu.core_type<tc>} {
    %c0 = arith.constant 0 : index
    %c0_0 = arith.constant 0 : index
    %0 = vector.load %arg0[%c0, %c0_0] : memref<2x1024xf32, #tpu.memory_space<vmem>>, vector<2x1024xf32>
    %c0_1 = arith.constant 0 : index
    %c0_2 = arith.constant 0 : index
    %1 = vector.load %arg1[%c0_1, %c0_2] : memref<1024x128xf32, #tpu.memory_space<vmem>>, vector<1024x128xf32>
    %cst = arith.constant dense<0.000000e+00> : vector<2x128xf32>
    %2 = tpu.matmul %0, %1, %cst {dimension_numbers = #tpu.dot_dimension_numbers<[1], [0], [0], [1], [0, 0, 1, 1], [], []>} : vector<2x1024xf32>, vector<1024x128xf32>, vector<2x128xf32> -> vector<2x128xf32>
    %c0_3 = arith.constant 0 : index
    %c0_4 = arith.constant 0 : index
    %3 = vector.load %arg2[%c0_3, %c0_4] : memref<1x128xf32, #tpu.memory_space<vmem>>, vector<1x128xf32>
    %4 = vector.broadcast %3 : vector<1x128xf32> to vector<2x128xf32>
    %5 = arith.addf %2, %4 : vector<2x128xf32>
    %cst_5 = arith.constant dense<0.000000e+00> : vector<2xf32>
    %6 = vector.multi_reduction <add>, %5, %cst_5 [1] : vector<2x128xf32> to vector<2xf32>
    %7 = vector.shape_cast %6 : vector<2xf32> to vector<2x1xf32>
    %8 = arith.mulf %5, %5 : vector<2x128xf32>
    %cst_6 = arith.constant dense<0.000000e+00> : vector<2xf32>
    %9 = vector.multi_reduction <add>, %8, %cst_6 [1] : vector<2x128xf32> to vector<2xf32>
    %10 = vector.shape_cast %9 : vector<2xf32> to vector<2x1xf32>
    %cst_7 = arith.constant 7.812500e-03 : f32
    %11 = vector.broadcast %cst_7 : f32 to vector<2x1xf32>
    %12 = arith.mulf %7, %11 : vector<2x1xf32>
    %cst_8 = arith.constant 7.812500e-03 : f32
    %13 = vector.broadcast %cst_8 : f32 to vector<2x1xf32>
    %14 = arith.mulf %10, %13 : vector<2x1xf32>
    %15 = arith.mulf %12, %12 : vector<2x1xf32>
    %16 = arith.subf %14, %15 : vector<2x1xf32>
    %17 = vector.broadcast %12 : vector<2x1xf32> to vector<2x128xf32>
    %18 = arith.subf %5, %17 : vector<2x128xf32>
    %cst_9 = arith.constant 9.99999974E-6 : f32
    %19 = vector.broadcast %cst_9 : f32 to vector<2x1xf32>
    %20 = arith.addf %16, %19 : vector<2x1xf32>
    %21 = math.rsqrt %20 : vector<2x1xf32>
    %22 = vector.broadcast %21 : vector<2x1xf32> to vector<2x128xf32>
    %23 = arith.mulf %18, %22 : vector<2x128xf32>
    %c0_10 = arith.constant 0 : index
    %c0_11 = arith.constant 0 : index
    %c0_12 = arith.constant 0 : index
    %24 = vector.load %arg3[%c0_10, %c0_11, %c0_12] : memref<3x1x128xf32, #tpu.memory_space<vmem>>, vector<1x1x128xf32>
    %25 = vector.shape_cast %24 : vector<1x1x128xf32> to vector<1x128xf32>
    %26 = vector.broadcast %25 : vector<1x128xf32> to vector<2x128xf32>
    %27 = arith.mulf %23, %26 : vector<2x128xf32>
    %c0_13 = arith.constant 0 : index
    %c0_14 = arith.constant 0 : index
    %c0_15 = arith.constant 0 : index
    %28 = vector.load %arg4[%c0_13, %c0_14, %c0_15] : memref<3x1x128xf32, #tpu.memory_space<vmem>>, vector<1x1x128xf32>
    %29 = vector.shape_cast %28 : vector<1x1x128xf32> to vector<1x128xf32>
    %30 = vector.broadcast %29 : vector<1x128xf32> to vector<2x128xf32>
    %31 = arith.addf %27, %30 : vector<2x128xf32>
    %cst_16 = arith.constant 5.000000e-01 : f32
    %32 = vector.broadcast %cst_16 : f32 to vector<2x128xf32>
    %33 = arith.mulf %32, %31 : vector<2x128xf32>
    %cst_17 = arith.constant 0.707106769 : f32
    %34 = vector.broadcast %cst_17 : f32 to vector<2x128xf32>
    %35 = arith.mulf %31, %34 : vector<2x128xf32>
    %36 = math.erf %35 : vector<2x128xf32>
    %cst_18 = arith.constant 1.000000e+00 : f32
    %37 = vector.broadcast %cst_18 : f32 to vector<2x128xf32>
    %38 = arith.addf %37, %36 : vector<2x128xf32>
    %39 = arith.mulf %33, %38 : vector<2x128xf32>
    %cst_19 = arith.constant 1.000000e+00 : f32
    %40 = vector.broadcast %cst_19 : f32 to vector<2x128xf32>
    %41 = arith.mulf %40, %5 : vector<2x128xf32>
    %c0_20 = arith.constant 0 : index
    %c0_21 = arith.constant 0 : index
    %c0_22 = arith.constant 0 : index
    %42 = vector.load %arg5[%c0_20, %c0_21, %c0_22] : memref<3x128x128xf32, #tpu.memory_space<vmem>>, vector<1x128x128xf32>
    %43 = vector.shape_cast %42 : vector<1x128x128xf32> to vector<128x128xf32>
    %cst_23 = arith.constant dense<0.000000e+00> : vector<2x128xf32>
    %44 = tpu.matmul %39, %43, %cst_23 {dimension_numbers = #tpu.dot_dimension_numbers<[1], [0], [0], [1], [0, 0, 1, 1], [], []>} : vector<2x128xf32>, vector<128x128xf32>, vector<2x128xf32> -> vector<2x128xf32>
    %45 = arith.addf %41, %44 : vector<2x128xf32>
    %c0_24 = arith.constant 0 : index
    %c0_25 = arith.constant 0 : index
    %c0_26 = arith.constant 0 : index
    %46 = vector.load %arg6[%c0_24, %c0_25, %c0_26] : memref<3x1x128xf32, #tpu.memory_space<vmem>>, vector<1x1x128xf32>
    %47 = vector.shape_cast %46 : vector<1x1x128xf32> to vector<1x128xf32>
    %48 = vector.broadcast %47 : vector<1x128xf32> to vector<2x128xf32>
    %49 = arith.addf %45, %48 : vector<2x128xf32>
    %cst_27 = arith.constant dense<0.000000e+00> : vector<2xf32>
    %50 = vector.multi_reduction <add>, %49, %cst_27 [1] : vector<2x128xf32> to vector<2xf32>
    %51 = vector.shape_cast %50 : vector<2xf32> to vector<2x1xf32>
    %52 = arith.mulf %49, %49 : vector<2x128xf32>
    %cst_28 = arith.constant dense<0.000000e+00> : vector<2xf32>
    %53 = vector.multi_reduction <add>, %52, %cst_28 [1] : vector<2x128xf32> to vector<2xf32>
    %54 = vector.shape_cast %53 : vector<2xf32> to vector<2x1xf32>
    %cst_29 = arith.constant 7.812500e-03 : f32
    %55 = vector.broadcast %cst_29 : f32 to vector<2x1xf32>
    %56 = arith.mulf %51, %55 : vector<2x1xf32>
    %cst_30 = arith.constant 7.812500e-03 : f32
    %57 = vector.broadcast %cst_30 : f32 to vector<2x1xf32>
    %58 = arith.mulf %54, %57 : vector<2x1xf32>
    %59 = arith.mulf %56, %56 : vector<2x1xf32>
    %60 = arith.subf %58, %59 : vector<2x1xf32>
    %61 = vector.broadcast %56 : vector<2x1xf32> to vector<2x128xf32>
    %62 = arith.subf %49, %61 : vector<2x128xf32>
    %cst_31 = arith.constant 9.99999974E-6 : f32
    %63 = vector.broadcast %cst_31 : f32 to vector<2x1xf32>
    %64 = arith.addf %60, %63 : vector<2x1xf32>
    %65 = math.rsqrt %64 : vector<2x1xf32>
    %66 = vector.broadcast %65 : vector<2x1xf32> to vector<2x128xf32>
    %67 = arith.mulf %62, %66 : vector<2x128xf32>
    %c1 = arith.constant 1 : index
    %c0_32 = arith.constant 0 : index
    %c0_33 = arith.constant 0 : index
    %68 = vector.load %arg3[%c1, %c0_32, %c0_33] : memref<3x1x128xf32, #tpu.memory_space<vmem>>, vector<1x1x128xf32>
    %69 = vector.shape_cast %68 : vector<1x1x128xf32> to vector<1x128xf32>
    %70 = vector.broadcast %69 : vector<1x128xf32> to vector<2x128xf32>
    %71 = arith.mulf %67, %70 : vector<2x128xf32>
    %c1_34 = arith.constant 1 : index
    %c0_35 = arith.constant 0 : index
    %c0_36 = arith.constant 0 : index
    %72 = vector.load %arg4[%c1_34, %c0_35, %c0_36] : memref<3x1x128xf32, #tpu.memory_space<vmem>>, vector<1x1x128xf32>
    %73 = vector.shape_cast %72 : vector<1x1x128xf32> to vector<1x128xf32>
    %74 = vector.broadcast %73 : vector<1x128xf32> to vector<2x128xf32>
    %75 = arith.addf %71, %74 : vector<2x128xf32>
    %cst_37 = arith.constant 5.000000e-01 : f32
    %76 = vector.broadcast %cst_37 : f32 to vector<2x128xf32>
    %77 = arith.mulf %76, %75 : vector<2x128xf32>
    %cst_38 = arith.constant 0.707106769 : f32
    %78 = vector.broadcast %cst_38 : f32 to vector<2x128xf32>
    %79 = arith.mulf %75, %78 : vector<2x128xf32>
    %80 = math.erf %79 : vector<2x128xf32>
    %cst_39 = arith.constant 1.000000e+00 : f32
    %81 = vector.broadcast %cst_39 : f32 to vector<2x128xf32>
    %82 = arith.addf %81, %80 : vector<2x128xf32>
    %83 = arith.mulf %77, %82 : vector<2x128xf32>
    %cst_40 = arith.constant 1.000000e+00 : f32
    %84 = vector.broadcast %cst_40 : f32 to vector<2x128xf32>
    %85 = arith.mulf %84, %49 : vector<2x128xf32>
    %c1_41 = arith.constant 1 : index
    %c0_42 = arith.constant 0 : index
    %c0_43 = arith.constant 0 : index
    %86 = vector.load %arg5[%c1_41, %c0_42, %c0_43] : memref<3x128x128xf32, #tpu.memory_space<vmem>>, vector<1x128x128xf32>
    %87 = vector.shape_cast %86 : vector<1x128x128xf32> to vector<128x128xf32>
    %cst_44 = arith.constant dense<0.000000e+00> : vector<2x128xf32>
    %88 = tpu.matmul %83, %87, %cst_44 {dimension_numbers = #tpu.dot_dimension_numbers<[1], [0], [0], [1], [0, 0, 1, 1], [], []>} : vector<2x128xf32>, vector<128x128xf32>, vector<2x128xf32> -> vector<2x128xf32>
    %89 = arith.addf %85, %88 : vector<2x128xf32>
    %c1_45 = arith.constant 1 : index
    %c0_46 = arith.constant 0 : index
    %c0_47 = arith.constant 0 : index
    %90 = vector.load %arg6[%c1_45, %c0_46, %c0_47] : memref<3x1x128xf32, #tpu.memory_space<vmem>>, vector<1x1x128xf32>
    %91 = vector.shape_cast %90 : vector<1x1x128xf32> to vector<1x128xf32>
    %92 = vector.broadcast %91 : vector<1x128xf32> to vector<2x128xf32>
    %93 = arith.addf %89, %92 : vector<2x128xf32>
    %cst_48 = arith.constant dense<0.000000e+00> : vector<2xf32>
    %94 = vector.multi_reduction <add>, %93, %cst_48 [1] : vector<2x128xf32> to vector<2xf32>
    %95 = vector.shape_cast %94 : vector<2xf32> to vector<2x1xf32>
    %96 = arith.mulf %93, %93 : vector<2x128xf32>
    %cst_49 = arith.constant dense<0.000000e+00> : vector<2xf32>
    %97 = vector.multi_reduction <add>, %96, %cst_49 [1] : vector<2x128xf32> to vector<2xf32>
    %98 = vector.shape_cast %97 : vector<2xf32> to vector<2x1xf32>
    %cst_50 = arith.constant 7.812500e-03 : f32
    %99 = vector.broadcast %cst_50 : f32 to vector<2x1xf32>
    %100 = arith.mulf %95, %99 : vector<2x1xf32>
    %cst_51 = arith.constant 7.812500e-03 : f32
    %101 = vector.broadcast %cst_51 : f32 to vector<2x1xf32>
    %102 = arith.mulf %98, %101 : vector<2x1xf32>
    %103 = arith.mulf %100, %100 : vector<2x1xf32>
    %104 = arith.subf %102, %103 : vector<2x1xf32>
    %105 = vector.broadcast %100 : vector<2x1xf32> to vector<2x128xf32>
    %106 = arith.subf %93, %105 : vector<2x128xf32>
    %cst_52 = arith.constant 9.99999974E-6 : f32
    %107 = vector.broadcast %cst_52 : f32 to vector<2x1xf32>
    %108 = arith.addf %104, %107 : vector<2x1xf32>
    %109 = math.rsqrt %108 : vector<2x1xf32>
    %110 = vector.broadcast %109 : vector<2x1xf32> to vector<2x128xf32>
    %111 = arith.mulf %106, %110 : vector<2x128xf32>
    %c2 = arith.constant 2 : index
    %c0_53 = arith.constant 0 : index
    %c0_54 = arith.constant 0 : index
    %112 = vector.load %arg3[%c2, %c0_53, %c0_54] : memref<3x1x128xf32, #tpu.memory_space<vmem>>, vector<1x1x128xf32>
    %113 = vector.shape_cast %112 : vector<1x1x128xf32> to vector<1x128xf32>
    %114 = vector.broadcast %113 : vector<1x128xf32> to vector<2x128xf32>
    %115 = arith.mulf %111, %114 : vector<2x128xf32>
    %c2_55 = arith.constant 2 : index
    %c0_56 = arith.constant 0 : index
    %c0_57 = arith.constant 0 : index
    %116 = vector.load %arg4[%c2_55, %c0_56, %c0_57] : memref<3x1x128xf32, #tpu.memory_space<vmem>>, vector<1x1x128xf32>
    %117 = vector.shape_cast %116 : vector<1x1x128xf32> to vector<1x128xf32>
    %118 = vector.broadcast %117 : vector<1x128xf32> to vector<2x128xf32>
    %119 = arith.addf %115, %118 : vector<2x128xf32>
    %cst_58 = arith.constant 5.000000e-01 : f32
    %120 = vector.broadcast %cst_58 : f32 to vector<2x128xf32>
    %121 = arith.mulf %120, %119 : vector<2x128xf32>
    %cst_59 = arith.constant 0.707106769 : f32
    %122 = vector.broadcast %cst_59 : f32 to vector<2x128xf32>
    %123 = arith.mulf %119, %122 : vector<2x128xf32>
    %124 = math.erf %123 : vector<2x128xf32>
    %cst_60 = arith.constant 1.000000e+00 : f32
    %125 = vector.broadcast %cst_60 : f32 to vector<2x128xf32>
    %126 = arith.addf %125, %124 : vector<2x128xf32>
    %127 = arith.mulf %121, %126 : vector<2x128xf32>
    %cst_61 = arith.constant 1.000000e+00 : f32
    %128 = vector.broadcast %cst_61 : f32 to vector<2x128xf32>
    %129 = arith.mulf %128, %93 : vector<2x128xf32>
    %c2_62 = arith.constant 2 : index
    %c0_63 = arith.constant 0 : index
    %c0_64 = arith.constant 0 : index
    %130 = vector.load %arg5[%c2_62, %c0_63, %c0_64] : memref<3x128x128xf32, #tpu.memory_space<vmem>>, vector<1x128x128xf32>
    %131 = vector.shape_cast %130 : vector<1x128x128xf32> to vector<128x128xf32>
    %cst_65 = arith.constant dense<0.000000e+00> : vector<2x128xf32>
    %132 = tpu.matmul %127, %131, %cst_65 {dimension_numbers = #tpu.dot_dimension_numbers<[1], [0], [0], [1], [0, 0, 1, 1], [], []>} : vector<2x128xf32>, vector<128x128xf32>, vector<2x128xf32> -> vector<2x128xf32>
    %133 = arith.addf %129, %132 : vector<2x128xf32>
    %c2_66 = arith.constant 2 : index
    %c0_67 = arith.constant 0 : index
    %c0_68 = arith.constant 0 : index
    %134 = vector.load %arg6[%c2_66, %c0_67, %c0_68] : memref<3x1x128xf32, #tpu.memory_space<vmem>>, vector<1x1x128xf32>
    %135 = vector.shape_cast %134 : vector<1x1x128xf32> to vector<1x128xf32>
    %136 = vector.broadcast %135 : vector<1x128xf32> to vector<2x128xf32>
    %137 = arith.addf %133, %136 : vector<2x128xf32>
    %cst_69 = arith.constant 5.000000e-01 : f32
    %138 = vector.broadcast %cst_69 : f32 to vector<2x128xf32>
    %139 = arith.mulf %138, %137 : vector<2x128xf32>
    %cst_70 = arith.constant 0.707106769 : f32
    %140 = vector.broadcast %cst_70 : f32 to vector<2x128xf32>
    %141 = arith.mulf %137, %140 : vector<2x128xf32>
    %142 = math.erf %141 : vector<2x128xf32>
    %cst_71 = arith.constant 1.000000e+00 : f32
    %143 = vector.broadcast %cst_71 : f32 to vector<2x128xf32>
    %144 = arith.addf %143, %142 : vector<2x128xf32>
    %145 = arith.mulf %139, %144 : vector<2x128xf32>
    %c0_72 = arith.constant 0 : index
    %c0_73 = arith.constant 0 : index
    %146 = vector.load %arg7[%c0_72, %c0_73] : memref<128x128xf32, #tpu.memory_space<vmem>>, vector<128x128xf32>
    %cst_74 = arith.constant dense<0.000000e+00> : vector<2x128xf32>
    %147 = tpu.matmul %145, %146, %cst_74 {dimension_numbers = #tpu.dot_dimension_numbers<[1], [0], [0], [1], [0, 0, 1, 1], [], []>} : vector<2x128xf32>, vector<128x128xf32>, vector<2x128xf32> -> vector<2x128xf32>
    %c0_75 = arith.constant 0 : index
    %c0_76 = arith.constant 0 : index
    %148 = vector.load %arg8[%c0_75, %c0_76] : memref<1x128xf32, #tpu.memory_space<vmem>>, vector<1x128xf32>
    %149 = vector.broadcast %148 : vector<1x128xf32> to vector<2x128xf32>
    %150 = arith.addf %147, %149 : vector<2x128xf32>
    %c0_77 = arith.constant 0 : index
    %c0_78 = arith.constant 0 : index
    %151 = vector.load %arg9[%c0_77, %c0_78] : memref<2x128xf32, #tpu.memory_space<vmem>>, vector<2x128xf32>
    tpu.vector_store %arg9[%c0_77, %c0_78], %150 {strides = array<i32>} : memref<2x128xf32, #tpu.memory_space<vmem>>, vector<2x128xf32>,
    return
  }
}

</mosaic_0001>

<llo_original>
// kernel: tpu_custom_call.1
$region0: #{tpu_custom_call.1}
  #allocation0 [shape = 'u32[]', space=smem, size = 0x4, offset = 0x4, fixed_abs, tag = 'smem constant byte address 0x4 - core index']
  #allocation1 [shape = 'u32[72,128]{1,0:T(1,128)}', space=vmem, size = 0x9000, scoped, tag = 'internal scratch']
  %s0 = inlined_call_operand.hbm [shape: f32[2,1024], index: 0, kind: input, shape index: {}]
  %s1 = inlined_call_operand.hbm [shape: f32[1024,128], index: 1, kind: input, shape index: {}]
  %s2 = inlined_call_operand.hbm [shape: f32[1,128], index: 2, kind: input, shape index: {}]
  %s3 = inlined_call_operand.hbm [shape: f32[3,1,128], index: 3, kind: input, shape index: {}]
  %s4 = inlined_call_operand.vmem [shape: f32[3,1,128], index: 4, kind: input, shape index: {}]
  %s5 = inlined_call_operand.hbm [shape: f32[3,128,128], index: 5, kind: input, shape index: {}]
  %s6 = inlined_call_operand.hbm [shape: f32[3,1,128], index: 6, kind: input, shape index: {}]
  %s7 = inlined_call_operand.hbm [shape: f32[128,128], index: 7, kind: input, shape index: {}]
  %s8 = inlined_call_operand.vmem [shape: f32[1,128], index: 8, kind: input, shape index: {}]
  %s9 = inlined_call_operand.hbm [shape: f32[2,128], index: 9, kind: output, shape index: {}]
  %s10 = sld [smem:[#allocation0]]
  $region74: #{tpu_custom_call.1} parent=0
    _
  %s12 = ssub.s32 1, %s10
  %s13 = scalar_select 0, %s12, %s10
  $region1: #{tpu_custom_call.1} parent=0
    #allocation2 [shape = 'u8[8192]{0}', space=vmem, size = 0x2000, scoped, tag = 'input window, operand 0, single buffered']
    #allocation3 [shape = 's32[1]{0}', space=sflag, size = 0x4, scoped, tag = 'scoped memory for tpu_custom_call.1']
    #allocation4 [shape = 's32[1]{0}', space=sflag, size = 0x4, scoped, tag = 'scoped memory for tpu_custom_call.1']
    #allocation5 [shape = 'u8[524288]{0}', space=vmem, size = 0x80000, scoped, tag = 'input window, operand 1, single buffered']
    #allocation6 [shape = 's32[1]{0}', space=sflag, size = 0x4, scoped, tag = 'scoped memory for tpu_custom_call.1']
    #allocation7 [shape = 'u8[512]{0}', space=vmem, size = 0x400, scoped, tag = 'input window, operand 2, single buffered']
    #allocation8 [shape = 'u8[1536]{0}', space=vmem, size = 0x800, scoped, tag = 'input window, operand 3, single buffered']
    #allocation9 [shape = 's32[1]{0}', space=sflag, size = 0x4, scoped, tag = 'scoped memory for tpu_custom_call.1']
    #allocation10 [shape = 'u8[196608]{0}', space=vmem, size = 0x30000, scoped, tag = 'input window, operand 5, single buffered']
    #allocation11 [shape = 'u8[1536]{0}', space=vmem, size = 0x800, scoped, tag = 'input window, operand 6, single buffered']
    #allocation12 [shape = 's32[1]{0}', space=sflag, size = 0x4, scoped, tag = 'scoped memory for tpu_custom_call.1']
    #allocation13 [shape = 'u8[65536]{0}', space=vmem, size = 0x10000, scoped, tag = 'input window, operand 7, single buffered']
    #allocation14 [shape = 'u8[1024]{0}', space=vmem, size = 0x400, scoped, tag = 'output window, operand 0, single buffered']
    %14 = vsyncpa [#allocation3], 0
    %15 = vsyncpa [#allocation6], 0
    %16 = vsyncpa [#allocation9], 0
    %17 = vsyncpa [#allocation12], 0
    %18 = vsyncpa [#allocation4], 0
    // Predicated region
    $region2: #{tpu_custom_call.1} parent=1 // pred_check
      _
    $region3: #{tpu_custom_call.1} parent=1 // pred_check_branch
      %20 = sbr.rel (0) target = $region5
    $region4: #{tpu_custom_call.1} parent=1 // pred_region
      %22 = vsyncadd [#allocation3], 0
      %s24 = sshll.u32 %s0, 4
      %s25 = int_to_ptr.hbm [resolvable:$true] %s24
      %s26 = sshll.u32 [#allocation2], 4
      %s27 = int_to_ptr.vmem [resolvable:$true] %s26
      %29 = dma.hbm_to_vmem [thread:$0]  %s25, 256, %s27, [#allocation3]
    $region5: #{tpu_custom_call.1} parent=1 // pred_fallthru
      _
    // Predicated region
    $region6: #{tpu_custom_call.1} parent=1 // pred_check
      _
    $region7: #{tpu_custom_call.1} parent=1 // pred_check_branch
      %31 = sbr.rel (0) target = $region9
    $region8: #{tpu_custom_call.1} parent=1 // pred_region
      %33 = vsyncadd [#allocation6], 0
      %s34 = sshll.u32 %s1, 4
      %s35 = int_to_ptr.hbm [resolvable:$true] %s34
      %s36 = sshll.u32 [#allocation5], 4
      %s37 = int_to_ptr.vmem [resolvable:$true] %s36
      %42 = dma.hbm_to_vmem [thread:$0]  %s35, 16384, %s37, [#allocation6], 128, 128, 8
    $region9: #{tpu_custom_call.1} parent=1 // pred_fallthru
      _
    // Predicated region
    $region10: #{tpu_custom_call.1} parent=1 // pred_check
      _
    $region11: #{tpu_custom_call.1} parent=1 // pred_check_branch
      %44 = sbr.rel (0) target = $region13
    $region12: #{tpu_custom_call.1} parent=1 // pred_region
      %46 = vsyncadd [#allocation6], 0
      %s48 = sshll.u32 %s2, 4
      %s49 = int_to_ptr.hbm [resolvable:$true] %s48
      %s50 = sshll.u32 [#allocation7], 4
      %s51 = int_to_ptr.vmem [resolvable:$true] %s50
      %53 = dma.hbm_to_vmem [thread:$0]  %s49, 16, %s51, [#allocation6]
    $region13: #{tpu_custom_call.1} parent=1 // pred_fallthru
      _
    // Predicated region
    $region14: #{tpu_custom_call.1} parent=1 // pred_check
      _
    $region15: #{tpu_custom_call.1} parent=1 // pred_check_branch
      %55 = sbr.rel (0) target = $region17
    $region16: #{tpu_custom_call.1} parent=1 // pred_region
      %57 = vsyncadd [#allocation9], 0
      %s58 = sshll.u32 %s3, 4
      %s59 = int_to_ptr.hbm [resolvable:$true] %s58
      %s60 = sshll.u32 [#allocation8], 4
      %s61 = int_to_ptr.vmem [resolvable:$true] %s60
      %66 = dma.hbm_to_vmem [thread:$0]  %s59, 48, %s61, [#allocation9], 16, 16, 1
    $region17: #{tpu_custom_call.1} parent=1 // pred_fallthru
      _
    // Predicated region
    $region18: #{tpu_custom_call.1} parent=1 // pred_check
      _
    $region19: #{tpu_custom_call.1} parent=1 // pred_check_branch
      %68 = sbr.rel (0) target = $region21
    $region20: #{tpu_custom_call.1} parent=1 // pred_region
      _
    $region21: #{tpu_custom_call.1} parent=1 // pred_fallthru
      _
    // Predicated region
    $region22: #{tpu_custom_call.1} parent=1 // pred_check
      _
    $region23: #{tpu_custom_call.1} parent=1 // pred_check_branch
      %70 = sbr.rel (0) target = $region25
    $region24: #{tpu_custom_call.1} parent=1 // pred_region
      %72 = vsyncadd [#allocation9], 0
      %s73 = sshll.u32 %s5, 4
      %s74 = int_to_ptr.hbm [resolvable:$true] %s73
      %s75 = sshll.u32 [#allocation10], 4
      %s76 = int_to_ptr.vmem [resolvable:$true] %s75
      %81 = dma.hbm_to_vmem [thread:$0]  %s74, 6144, %s76, [#allocation9], 128, 128, 8
    $region25: #{tpu_custom_call.1} parent=1 // pred_fallthru
      _
    // Predicated region
    $region26: #{tpu_custom_call.1} parent=1 // pred_check
      _
    $region27: #{tpu_custom_call.1} parent=1 // pred_check_branch
      %83 = sbr.rel (0) target = $region29
    $region28: #{tpu_custom_call.1} parent=1 // pred_region
      %85 = vsyncadd [#allocation12], 0
      %s86 = sshll.u32 %s6, 4
      %s87 = int_to_ptr.hbm [resolvable:$true] %s86
      %s88 = sshll.u32 [#allocation11], 4
      %s89 = int_to_ptr.vmem [resolvable:$true] %s88
      %94 = dma.hbm_to_vmem [thread:$0]  %s87, 48, %s89, [#allocation12], 16, 16, 1
    $region29: #{tpu_custom_call.1} parent=1 // pred_fallthru
      _
    // Predicated region
    $region30: #{tpu_custom_call.1} parent=1 // pred_check
      _
    $region31: #{tpu_custom_call.1} parent=1 // pred_check_branch
      %96 = sbr.rel (0) target = $region33
    $region32: #{tpu_custom_call.1} parent=1 // pred_region
      %98 = vsyncadd [#allocation12], 0
      %s99 = sshll.u32 %s7, 4
      %s100 = int_to_ptr.hbm [resolvable:$true] %s99
      %s101 = sshll.u32 [#allocation13], 4
      %s102 = int_to_ptr.vmem [resolvable:$true] %s101
      %107 = dma.hbm_to_vmem [thread:$0]  %s100, 2048, %s102, [#allocation12], 128, 128, 8
    $region33: #{tpu_custom_call.1} parent=1 // pred_fallthru
      _
    // Predicated region
    $region34: #{tpu_custom_call.1} parent=1 // pred_check
      _
    $region35: #{tpu_custom_call.1} parent=1 // pred_check_branch
      %109 = sbr.rel (0) target = $region37
    $region36: #{tpu_custom_call.1} parent=1 // pred_region
      _
    $region37: #{tpu_custom_call.1} parent=1 // pred_fallthru
      _
    // Predicated region
    $region38: #{tpu_custom_call.1} parent=1 // pred_check
      _
    $region39: #{tpu_custom_call.1} parent=1 // pred_check_branch
      %111 = sbr.rel (0) target = $region41
    $region40: #{tpu_custom_call.1} parent=1 // pred_region
      %113 = dma.done [#allocation3], 256
    $region41: #{tpu_custom_call.1} parent=1 // pred_fallthru
      _
    // Predicated region
    $region42: #{tpu_custom_call.1} parent=1 // pred_check
      _
    $region43: #{tpu_custom_call.1} parent=1 // pred_check_branch
      %115 = sbr.rel (0) target = $region45
    $region44: #{tpu_custom_call.1} parent=1 // pred_region
      %117 = dma.done [#allocation6], 16384
    $region45: #{tpu_custom_call.1} parent=1 // pred_fallthru
      _
    // Predicated region
    $region46: #{tpu_custom_call.1} parent=1 // pred_check
      _
    $region47: #{tpu_custom_call.1} parent=1 // pred_check_branch
      %119 = sbr.rel (0) target = $region49
    $region48: #{tpu_custom_call.1} parent=1 // pred_region
      %121 = dma.done [#allocation6], 16
    $region49: #{tpu_custom_call.1} parent=1 // pred_fallthru
      _
    // Predicated region
    $region50: #{tpu_custom_call.1} parent=1 // pred_check
      _
    $region51: #{tpu_custom_call.1} parent=1 // pred_check_branch
      %123 = sbr.rel (0) target = $region53
    $region52: #{tpu_custom_call.1} parent=1 // pred_region
      %125 = dma.done [#allocation9], 48
    $region53: #{tpu_custom_call.1} parent=1 // pred_fallthru
      _
    // Predicated region
    $region54: #{tpu_custom_call.1} parent=1 // pred_check
      _
    $region55: #{tpu_custom_call.1} parent=1 // pred_check_branch
      %127 = sbr.rel (0) target = $region57
    $region56: #{tpu_custom_call.1} parent=1 // pred_region
      %129 = dma.done [#allocation9], 6144
    $region57: #{tpu_custom_call.1} parent=1 // pred_fallthru
      _
    // Predicated region
    $region58: #{tpu_custom_call.1} parent=1 // pred_check
      _
    $region59: #{tpu_custom_call.1} parent=1 // pred_check_branch
      %131 = sbr.rel (0) target = $region61
    $region60: #{tpu_custom_call.1} parent=1 // pred_region
      %133 = dma.done [#allocation12], 48
    $region61: #{tpu_custom_call.1} parent=1 // pred_fallthru
      _
    // Predicated region
    $region62: #{tpu_custom_call.1} parent=1 // pred_check
      _
    $region63: #{tpu_custom_call.1} parent=1 // pred_check_branch
      %135 = sbr.rel (0) target = $region65
    $region64: #{tpu_custom_call.1} parent=1 // pred_region
      %137 = dma.done [#allocation12], 2048
    $region65: #{tpu_custom_call.1} parent=1 // pred_fallthru
      _
    %v138 = vld [vmem:[#allocation2] sm:$0xff]
    %v139 = vld [vmem:[#allocation2 + $0x8] sm:$0xff]
    %v140 = vld [vmem:[#allocation5] sm:$0xff]
    %v141 = vld [vmem:[#allocation5 + $0x8] sm:$0xff]
    %v142 = vld [vmem:[#allocation5 + $0x10] sm:$0xff]
    %v143 = vld [vmem:[#allocation5 + $0x18] sm:$0xff]
    %v144 = vld [vmem:[#allocation5 + $0x20] sm:$0xff]
    %v145 = vld [vmem:[#allocation5 + $0x28] sm:$0xff]
    %v146 = vld [vmem:[#allocation5 + $0x30] sm:$0xff]
    %v147 = vld [vmem:[#allocation5 + $0x38] sm:$0xff]
    %v148 = vld [vmem:[#allocation5 + $0x40] sm:$0xff]
    %v149 = vld [vmem:[#allocation5 + $0x48] sm:$0xff]
    %v150 = vld [vmem:[#allocation5 + $0x50] sm:$0xff]
    %v151 = vld [vmem:[#allocation5 + $0x58] sm:$0xff]
    %v152 = vld [vmem:[#allocation5 + $0x60] sm:$0xff]
    %v153 = vld [vmem:[#allocation5 + $0x68] sm:$0xff]
    %v154 = vld [vmem:[#allocation5 + $0x70] sm:$0xff]
    %v155 = vld [vmem:[#allocation5 + $0x78] sm:$0xff]
    %v156 = vld [vmem:[#allocation5 + $0x80] sm:$0xff]
    %v157 = vld [vmem:[#allocation5 + $0x88] sm:$0xff]
    %v158 = vld [vmem:[#allocation5 + $0x90] sm:$0xff]
    %v159 = vld [vmem:[#allocation5 + $0x98] sm:$0xff]
    %v160 = vld [vmem:[#allocation5 + $0xa0] sm:$0xff]
    %v161 = vld [vmem:[#allocation5 + $0xa8] sm:$0xff]
    %v162 = vld [vmem:[#allocation5 + $0xb0] sm:$0xff]
    %v163 = vld [vmem:[#allocation5 + $0xb8] sm:$0xff]
    %v164 = vld [vmem:[#allocation5 + $0xc0] sm:$0xff]
    %v165 = vld [vmem:[#allocation5 + $0xc8] sm:$0xff]
    %v166 = vld [vmem:[#allocation5 + $0xd0] sm:$0xff]
    %v167 = vld [vmem:[#allocation5 + $0xd8] sm:$0xff]
    %v168 = vld [vmem:[#allocation5 + $0xe0] sm:$0xff]
    %v169 = vld [vmem:[#allocation5 + $0xe8] sm:$0xff]
    %v170 = vld [vmem:[#allocation5 + $0xf0] sm:$0xff]
    %v171 = vld [vmem:[#allocation5 + $0xf8] sm:$0xff]
    %v172 = vld [vmem:[#allocation5 + $0x100] sm:$0xff]
    %v173 = vld [vmem:[#allocation5 + $0x108] sm:$0xff]
    %v174 = vld [vmem:[#allocation5 + $0x110] sm:$0xff]
    %v175 = vld [vmem:[#allocation5 + $0x118] sm:$0xff]
    %v176 = vld [vmem:[#allocation5 + $0x120] sm:$0xff]
    %v177 = vld [vmem:[#allocation5 + $0x128] sm:$0xff]
    %v178 = vld [vmem:[#allocation5 + $0x130] sm:$0xff]
    %v179 = vld [vmem:[#allocation5 + $0x138] sm:$0xff]
    %v180 = vld [vmem:[#allocation5 + $0x140] sm:$0xff]
    %v181 = vld [vmem:[#allocation5 + $0x148] sm:$0xff]
    %v182 = vld [vmem:[#allocation5 + $0x150] sm:$0xff]
    %v183 = vld [vmem:[#allocation5 + $0x158] sm:$0xff]
    %v184 = vld [vmem:[#allocation5 + $0x160] sm:$0xff]
    %v185 = vld [vmem:[#allocation5 + $0x168] sm:$0xff]
    %v186 = vld [vmem:[#allocation5 + $0x170] sm:$0xff]
    %v187 = vld [vmem:[#allocation5 + $0x178] sm:$0xff]
    %v188 = vld [vmem:[#allocation5 + $0x180] sm:$0xff]
    %v189 = vld [vmem:[#allocation5 + $0x188] sm:$0xff]
    %v190 = vld [vmem:[#allocation5 + $0x190] sm:$0xff]
    %v191 = vld [vmem:[#allocation5 + $0x198] sm:$0xff]
    %v192 = vld [vmem:[#allocation5 + $0x1a0] sm:$0xff]
    %v193 = vld [vmem:[#allocation5 + $0x1a8] sm:$0xff]
    %v194 = vld [vmem:[#allocation5 + $0x1b0] sm:$0xff]
    %v195 = vld [vmem:[#allocation5 + $0x1b8] sm:$0xff]
    %v196 = vld [vmem:[#allocation5 + $0x1c0] sm:$0xff]
    %v197 = vld [vmem:[#allocation5 + $0x1c8] sm:$0xff]
    %v198 = vld [vmem:[#allocation5 + $0x1d0] sm:$0xff]
    %v199 = vld [vmem:[#allocation5 + $0x1d8] sm:$0xff]
    %v200 = vld [vmem:[#allocation5 + $0x1e0] sm:$0xff]
    %v201 = vld [vmem:[#allocation5 + $0x1e8] sm:$0xff]
    %v202 = vld [vmem:[#allocation5 + $0x1f0] sm:$0xff]
    %v203 = vld [vmem:[#allocation5 + $0x1f8] sm:$0xff]
    %v204 = vld [vmem:[#allocation5 + $0x200] sm:$0xff]
    %v205 = vld [vmem:[#allocation5 + $0x208] sm:$0xff]
    %v206 = vld [vmem:[#allocation5 + $0x210] sm:$0xff]
    %v207 = vld [vmem:[#allocation5 + $0x218] sm:$0xff]
    %v208 = vld [vmem:[#allocation5 + $0x220] sm:$0xff]
    %v209 = vld [vmem:[#allocation5 + $0x228] sm:$0xff]
    %v210 = vld [vmem:[#allocation5 + $0x230] sm:$0xff]
    %v211 = vld [vmem:[#allocation5 + $0x238] sm:$0xff]
    %v212 = vld [vmem:[#allocation5 + $0x240] sm:$0xff]
    %v213 = vld [vmem:[#allocation5 + $0x248] sm:$0xff]
    %v214 = vld [vmem:[#allocation5 + $0x250] sm:$0xff]
    %v215 = vld [vmem:[#allocation5 + $0x258] sm:$0xff]
    %v216 = vld [vmem:[#allocation5 + $0x260] sm:$0xff]
    %v217 = vld [vmem:[#allocation5 + $0x268] sm:$0xff]
    %v218 = vld [vmem:[#allocation5 + $0x270] sm:$0xff]
    %v219 = vld [vmem:[#allocation5 + $0x278] sm:$0xff]
    %v220 = vld [vmem:[#allocation5 + $0x280] sm:$0xff]
    %v221 = vld [vmem:[#allocation5 + $0x288] sm:$0xff]
    %v222 = vld [vmem:[#allocation5 + $0x290] sm:$0xff]
    %v223 = vld [vmem:[#allocation5 + $0x298] sm:$0xff]
    %v224 = vld [vmem:[#allocation5 + $0x2a0] sm:$0xff]
    %v225 = vld [vmem:[#allocation5 + $0x2a8] sm:$0xff]
    %v226 = vld [vmem:[#allocation5 + $0x2b0] sm:$0xff]
    %v227 = vld [vmem:[#allocation5 + $0x2b8] sm:$0xff]
    %v228 = vld [vmem:[#allocation5 + $0x2c0] sm:$0xff]
    %v229 = vld [vmem:[#allocation5 + $0x2c8] sm:$0xff]
    %v230 = vld [vmem:[#allocation5 + $0x2d0] sm:$0xff]
    %v231 = vld [vmem:[#allocation5 + $0x2d8] sm:$0xff]
    %v232 = vld [vmem:[#allocation5 + $0x2e0] sm:$0xff]
    %v233 = vld [vmem:[#allocation5 + $0x2e8] sm:$0xff]
    %v234 = vld [vmem:[#allocation5 + $0x2f0] sm:$0xff]
    %v235 = vld [vmem:[#allocation5 + $0x2f8] sm:$0xff]
    %v236 = vld [vmem:[#allocation5 + $0x300] sm:$0xff]
    %v237 = vld [vmem:[#allocation5 + $0x308] sm:$0xff]
    %v238 = vld [vmem:[#allocation5 + $0x310] sm:$0xff]
    %v239 = vld [vmem:[#allocation5 + $0x318] sm:$0xff]
    %v240 = vld [vmem:[#allocation5 + $0x320] sm:$0xff]
    %v241 = vld [vmem:[#allocation5 + $0x328] sm:$0xff]
    %v242 = vld [vmem:[#allocation5 + $0x330] sm:$0xff]
    %v243 = vld [vmem:[#allocation5 + $0x338] sm:$0xff]
    %v244 = vld [vmem:[#allocation5 + $0x340] sm:$0xff]
    %v245 = vld [vmem:[#allocation5 + $0x348] sm:$0xff]
    %v246 = vld [vmem:[#allocation5 + $0x350] sm:$0xff]
    %v247 = vld [vmem:[#allocation5 + $0x358] sm:$0xff]
    %v248 = vld [vmem:[#allocation5 + $0x360] sm:$0xff]
    %v249 = vld [vmem:[#allocation5 + $0x368] sm:$0xff]
    %v250 = vld [vmem:[#allocation5 + $0x370] sm:$0xff]
    %v251 = vld [vmem:[#allocation5 + $0x378] sm:$0xff]
    %v252 = vld [vmem:[#allocation5 + $0x380] sm:$0xff]
    %v253 = vld [vmem:[#allocation5 + $0x388] sm:$0xff]
    %v254 = vld [vmem:[#allocation5 + $0x390] sm:$0xff]
    %v255 = vld [vmem:[#allocation5 + $0x398] sm:$0xff]
    %v256 = vld [vmem:[#allocation5 + $0x3a0] sm:$0xff]
    %v257 = vld [vmem:[#allocation5 + $0x3a8] sm:$0xff]
    %v258 = vld [vmem:[#allocation5 + $0x3b0] sm:$0xff]
    %v259 = vld [vmem:[#allocation5 + $0x3b8] sm:$0xff]
    %v260 = vld [vmem:[#allocation5 + $0x3c0] sm:$0xff]
    %v261 = vld [vmem:[#allocation5 + $0x3c8] sm:$0xff]
    %v262 = vld [vmem:[#allocation5 + $0x3d0] sm:$0xff]
    %v263 = vld [vmem:[#allocation5 + $0x3d8] sm:$0xff]
    %v264 = vld [vmem:[#allocation5 + $0x3e0] sm:$0xff]
    %v265 = vld [vmem:[#allocation5 + $0x3e8] sm:$0xff]
    %v266 = vld [vmem:[#allocation5 + $0x3f0] sm:$0xff]
    %v267 = vld [vmem:[#allocation5 + $0x3f8] sm:$0xff]
    %v268 = vld [vmem:[#allocation7] sm:$0x1]
    %v270 = vperm.slane %v268, 0
    %274 = vst [vmem:[#allocation1] ss:$4 sm:$0xff] %v138
    %s275 = scalar_lea.vmem [#allocation1], 32
    %276 = vst [vmem:[%s275] ss:$4 sm:$0xff] %v139
    %v277 = vld.sshfl [vmem:[#allocation1] sm:$0xff pattern:$0x73625140]
    %v278 = vld.sshfl [vmem:[#allocation1 + $0x8] sm:$0xff pattern:$0x73625140]
    %v279 = vld.sshfl [vmem:[#allocation1 + $0x10] sm:$0xff pattern:$0x73625140]
    %v280 = vld.sshfl [vmem:[#allocation1 + $0x18] sm:$0xff pattern:$0x73625140]
    %v281 = vld.sshfl [vmem:[#allocation1 + $0x20] sm:$0xff pattern:$0x73625140]
    %v282 = vld.sshfl [vmem:[#allocation1 + $0x28] sm:$0xff pattern:$0x73625140]
    %v283 = vld.sshfl [vmem:[#allocation1 + $0x30] sm:$0xff pattern:$0x73625140]
    %v284 = vld.sshfl [vmem:[#allocation1 + $0x38] sm:$0xff pattern:$0x73625140]
    %293 = vmatpush.msra.mxu0 %v155
    %294 = vmatpush.msra.mxu0 %v154
    %295 = vmatpush.msra.mxu0 %v153
    %296 = vmatpush.msra.mxu0 %v152
    %297 = vmatpush.msra.mxu0 %v151
    %298 = vmatpush.msra.mxu0 %v150
    %299 = vmatpush.msra.mxu0 %v149
    %300 = vmatpush.msra.mxu0 %v148
    %301 = vmatpush.msra.mxu0 %v147
    %302 = vmatpush.msra.mxu0 %v146
    %303 = vmatpush.msra.mxu0 %v145
    %304 = vmatpush.msra.mxu0 %v144
    %305 = vmatpush.msra.mxu0 %v143
    %306 = vmatpush.msra.mxu0 %v142
    %307 = vmatpush.msra.mxu0 %v141
    %308 = vmatpush.msra.mxu0 %v140
    %309 = vmatmul.f32.gmra.mxu0 %v277
    %v310 = vpop.f32.mrf.mxu0
    %v311 = vadd.f32 %v270, %v310
    %312 = vdwg.mxu0
    %313 = vmatpush.msra.mxu0 %v171
    %314 = vmatpush.msra.mxu0 %v170
    %315 = vmatpush.msra.mxu0 %v169
    %316 = vmatpush.msra.mxu0 %v168
    %317 = vmatpush.msra.mxu0 %v167
    %318 = vmatpush.msra.mxu0 %v166
    %319 = vmatpush.msra.mxu0 %v165
    %320 = vmatpush.msra.mxu0 %v164
    %321 = vmatpush.msra.mxu0 %v163
    %322 = vmatpush.msra.mxu0 %v162
    %323 = vmatpush.msra.mxu0 %v161
    %324 = vmatpush.msra.mxu0 %v160
    %325 = vmatpush.msra.mxu0 %v159
    %326 = vmatpush.msra.mxu0 %v158
    %327 = vmatpush.msra.mxu0 %v157
    %328 = vmatpush.msra.mxu0 %v156
    %329 = vmatmul.f32.gmra.mxu0 %v278
    %v330 = vpop.f32.mrf.mxu0
    %v331 = vadd.f32 %v311, %v330
    %332 = vdwg.mxu0
    %333 = vmatpush.msra.mxu0 %v187
    %334 = vmatpush.msra.mxu0 %v186
    %335 = vmatpush.msra.mxu0 %v185
    %336 = vmatpush.msra.mxu0 %v184
    %337 = vmatpush.msra.mxu0 %v183
    %338 = vmatpush.msra.mxu0 %v182
    %339 = vmatpush.msra.mxu0 %v181
    %340 = vmatpush.msra.mxu0 %v180
    %341 = vmatpush.msra.mxu0 %v179
    %342 = vmatpush.msra.mxu0 %v178
    %343 = vmatpush.msra.mxu0 %v177
    %344 = vmatpush.msra.mxu0 %v176
    %345 = vmatpush.msra.mxu0 %v175
    %346 = vmatpush.msra.mxu0 %v174
    %347 = vmatpush.msra.mxu0 %v173
    %348 = vmatpush.msra.mxu0 %v172
    %349 = vmatmul.f32.gmra.mxu0 %v279
    %v350 = vpop.f32.mrf.mxu0
    %v351 = vadd.f32 %v331, %v350
    %352 = vdwg.mxu0
    %353 = vmatpush.msra.mxu0 %v203
    %354 = vmatpush.msra.mxu0 %v202
    %355 = vmatpush.msra.mxu0 %v201
    %356 = vmatpush.msra.mxu0 %v200
    %357 = vmatpush.msra.mxu0 %v199
    %358 = vmatpush.msra.mxu0 %v198
    %359 = vmatpush.msra.mxu0 %v197
    %360 = vmatpush.msra.mxu0 %v196
    %361 = vmatpush.msra.mxu0 %v195
    %362 = vmatpush.msra.mxu0 %v194
    %363 = vmatpush.msra.mxu0 %v193
    %364 = vmatpush.msra.mxu0 %v192
    %365 = vmatpush.msra.mxu0 %v191
    %366 = vmatpush.msra.mxu0 %v190
    %367 = vmatpush.msra.mxu0 %v189
    %368 = vmatpush.msra.mxu0 %v188
    %369 = vmatmul.f32.gmra.mxu0 %v280
    %v370 = vpop.f32.mrf.mxu0
    %v371 = vadd.f32 %v351, %v370
    %372 = vdwg.mxu0
    %373 = vmatpush.msra.mxu0 %v219
    %374 = vmatpush.msra.mxu0 %v218
    %375 = vmatpush.msra.mxu0 %v217
    %376 = vmatpush.msra.mxu0 %v216
    %377 = vmatpush.msra.mxu0 %v215
    %378 = vmatpush.msra.mxu0 %v214
    %379 = vmatpush.msra.mxu0 %v213
    %380 = vmatpush.msra.mxu0 %v212
    %381 = vmatpush.msra.mxu0 %v211
    %382 = vmatpush.msra.mxu0 %v210
    %383 = vmatpush.msra.mxu0 %v209
    %384 = vmatpush.msra.mxu0 %v208
    %385 = vmatpush.msra.mxu0 %v207
    %386 = vmatpush.msra.mxu0 %v206
    %387 = vmatpush.msra.mxu0 %v205
    %388 = vmatpush.msra.mxu0 %v204
    %389 = vmatmul.f32.gmra.mxu0 %v281
    %v390 = vpop.f32.mrf.mxu0
    %v391 = vadd.f32 %v371, %v390
    %392 = vdwg.mxu0
    %393 = vmatpush.msra.mxu0 %v235
    %394 = vmatpush.msra.mxu0 %v234
    %395 = vmatpush.msra.mxu0 %v233
    %396 = vmatpush.msra.mxu0 %v232
    %397 = vmatpush.msra.mxu0 %v231
    %398 = vmatpush.msra.mxu0 %v230
    %399 = vmatpush.msra.mxu0 %v229
    %400 = vmatpush.msra.mxu0 %v228
    %401 = vmatpush.msra.mxu0 %v227
    %402 = vmatpush.msra.mxu0 %v226
    %403 = vmatpush.msra.mxu0 %v225
    %404 = vmatpush.msra.mxu0 %v224
    %405 = vmatpush.msra.mxu0 %v223
    %406 = vmatpush.msra.mxu0 %v222
    %407 = vmatpush.msra.mxu0 %v221
    %408 = vmatpush.msra.mxu0 %v220
    %409 = vmatmul.f32.gmra.mxu0 %v282
    %v410 = vpop.f32.mrf.mxu0
    %v411 = vadd.f32 %v391, %v410
    %412 = vdwg.mxu0
    %413 = vmatpush.msra.mxu0 %v251
    %414 = vmatpush.msra.mxu0 %v250
    %415 = vmatpush.msra.mxu0 %v249
    %416 = vmatpush.msra.mxu0 %v248
    %417 = vmatpush.msra.mxu0 %v247
    %418 = vmatpush.msra.mxu0 %v246
    %419 = vmatpush.msra.mxu0 %v245
    %420 = vmatpush.msra.mxu0 %v244
    %421 = vmatpush.msra.mxu0 %v243
    %422 = vmatpush.msra.mxu0 %v242
    %423 = vmatpush.msra.mxu0 %v241
    %424 = vmatpush.msra.mxu0 %v240
    %425 = vmatpush.msra.mxu0 %v239
    %426 = vmatpush.msra.mxu0 %v238
    %427 = vmatpush.msra.mxu0 %v237
    %428 = vmatpush.msra.mxu0 %v236
    %429 = vmatmul.f32.gmra.mxu0 %v283
    %v430 = vpop.f32.mrf.mxu0
    %v431 = vadd.f32 %v411, %v430
    %432 = vdwg.mxu0
    %433 = vmatpush.msra.mxu0 %v267
    %434 = vmatpush.msra.mxu0 %v266
    %435 = vmatpush.msra.mxu0 %v265
    %436 = vmatpush.msra.mxu0 %v264
    %437 = vmatpush.msra.mxu0 %v263
    %438 = vmatpush.msra.mxu0 %v262
    %439 = vmatpush.msra.mxu0 %v261
    %440 = vmatpush.msra.mxu0 %v260
    %441 = vmatpush.msra.mxu0 %v259
    %442 = vmatpush.msra.mxu0 %v258
    %443 = vmatpush.msra.mxu0 %v257
    %444 = vmatpush.msra.mxu0 %v256
    %445 = vmatpush.msra.mxu0 %v255
    %446 = vmatpush.msra.mxu0 %v254
    %447 = vmatpush.msra.mxu0 %v253
    %448 = vmatpush.msra.mxu0 %v252
    %449 = vmatmul.f32.gmra.mxu0 %v284
    %v450 = vpop.f32.mrf.mxu0
    %v451 = vadd.f32 %v431, %v450
    %452 = vdwg.mxu0
    %vm453 = vcmask 1041408
    %v454 = vsel %vm453, %v451, 0.0
    %455 = vadd.xlane.f32.xlu0 %v454
    %v456 = vpop.xlane.xlu0 %455
    %v457 = vmul.f32 %v451, %v451
    %v458 = vsel %vm453, %v457, 0.0
    %459 = vadd.xlane.f32.xlu0 %v458
    %v460 = vpop.xlane.xlu0 %459
    %v461 = vmul.f32 %v456, 0.0078125
    %v462 = vmul.f32 %v460, 0.0078125
    %v463 = vmul.f32 %v461, %v461
    %v464 = vsub.f32 %v462, %v463
    %v465 = vsub.f32 %v451, %v461
    %v466 = vadd.f32 %v464, 1e-05
    %v467 = vrsqrt.pop %v466
    %v468 = vmul.f32 %v467, %v466
    %v469 = vmul.f32 %v468, %v467
    %v470 = vmul.f32 0.5, %v469
    %v471 = vsub.f32 1.5, %v470
    %v472 = vmul.f32 %v467, %v471
    %vm473 = vweird.f32 %v466
    %vm474 = vweird.f32 %v467
    %vm475 = vmor %vm473, %vm474
    %v476 = vsel %vm475, %v467, %v472
    %v477 = vmul.f32 %v465, %v476
    %v478 = vld [vmem:[#allocation8] sm:$0x1]
    %v480 = vperm.slane %v478, 0
    %v482 = vmul.f32 %v477, %v480
    %v483 = vld [vmem:[%s4] sm:$0x1]
    %v485 = vperm.slane %v483, 0
    %v487 = vadd.f32 %v482, %v485
    %v488 = vmul.f32 %v487, 0.5
    %v489 = vmul.f32 %v487, 0.70710677
    %v490 = vmul.f32 %v489, %v489
    %v491 = vmin.f32 16.0, %v490
    %v492 = vmul.f32 %v491, 2.1237322e-06
    %v493 = vadd.f32 %v492, 0.00028619796
    %v494 = vmul.f32 %v491, %v493
    %v495 = vadd.f32 %v494, 0.0036580483
    %v496 = vmul.f32 %v491, %v495
    %v497 = vadd.f32 %v496, 0.05243302
    %v498 = vmul.f32 %v491, %v497
    %v499 = vadd.f32 %v498, 0.18741608
    %v500 = vmul.f32 %v491, %v499
    %v501 = vadd.f32 %v500, 1.1283791
    %v502 = vmul.f32 %v489, %v501
    %v503 = vmul.f32 %v491, 3.8918573e-05
    %v504 = vadd.f32 %v503, 0.001143296
    %v505 = vmul.f32 %v491, %v504
    %v506 = vadd.f32 %v505, 0.014752088
    %v507 = vmul.f32 %v491, %v506
    %v508 = vadd.f32 %v507, 0.112945676
    %v509 = vmul.f32 %v491, %v508
    %v510 = vadd.f32 %v509, 0.4994258
    %v511 = vmul.f32 %v491, %v510
    %v512 = vadd.f32 %v511, 1.0
    %v513 = vrcp.pop %v512
    %v514 = vmul.f32 %v512, %v513
    %v515 = vsub.f32 1.0, %v514
    %v516 = vmul.f32 %v513, %v515
    %v517 = vadd.f32 %v513, %v516
    %vm518 = vweird.f32 %v512
    %vm519 = vweird.f32 %v513
    %vm520 = vmor %vm518, %vm519
    %v521 = vsel %vm520, %v513, %v517
    %v522 = vand.u32 2147483647, %v512
    %vm523 = vcmp.eq.f32.partialorder %v522, 8.507059e+37
    %v524 = vand.u32 %v512, 2147483648
    %v525 = vor.u32 1.1754944e-38, %v524
    %v526 = vsel %vm523, %v525, %v521
    %v527 = vmul.f32 %v502, %v526
    %v528 = vmin.f32 %v527, 1.0
    %v529 = vmax.f32 %v528, -1.0
    %v530 = vadd.f32 %v529, 1.0
    %v531 = vmul.f32 %v488, %v530
    %v532 = vld [vmem:[#allocation10] sm:$0xff]
    %v533 = vld [vmem:[#allocation10 + $0x8] sm:$0xff]
    %v534 = vld [vmem:[#allocation10 + $0x10] sm:$0xff]
    %v535 = vld [vmem:[#allocation10 + $0x18] sm:$0xff]
    %v536 = vld [vmem:[#allocation10 + $0x20] sm:$0xff]
    %v537 = vld [vmem:[#allocation10 + $0x28] sm:$0xff]
    %v538 = vld [vmem:[#allocation10 + $0x30] sm:$0xff]
    %v539 = vld [vmem:[#allocation10 + $0x38] sm:$0xff]
    %v540 = vld [vmem:[#allocation10 + $0x40] sm:$0xff]
    %v541 = vld [vmem:[#allocation10 + $0x48] sm:$0xff]
    %v542 = vld [vmem:[#allocation10 + $0x50] sm:$0xff]
    %v543 = vld [vmem:[#allocation10 + $0x58] sm:$0xff]
    %v544 = vld [vmem:[#allocation10 + $0x60] sm:$0xff]
    %v545 = vld [vmem:[#allocation10 + $0x68] sm:$0xff]
    %v546 = vld [vmem:[#allocation10 + $0x70] sm:$0xff]
    %v547 = vld [vmem:[#allocation10 + $0x78] sm:$0xff]
    %548 = vmatpush.msra.mxu0 %v547
    %549 = vmatpush.msra.mxu0 %v546
    %550 = vmatpush.msra.mxu0 %v545
    %551 = vmatpush.msra.mxu0 %v544
    %552 = vmatpush.msra.mxu0 %v543
    %553 = vmatpush.msra.mxu0 %v542
    %554 = vmatpush.msra.mxu0 %v541
    %555 = vmatpush.msra.mxu0 %v540
    %556 = vmatpush.msra.mxu0 %v539
    %557 = vmatpush.msra.mxu0 %v538
    %558 = vmatpush.msra.mxu0 %v537
    %559 = vmatpush.msra.mxu0 %v536
    %560 = vmatpush.msra.mxu0 %v535
    %561 = vmatpush.msra.mxu0 %v534
    %562 = vmatpush.msra.mxu0 %v533
    %563 = vmatpush.msra.mxu0 %v532
    %564 = vmatmul.f32.gmra.mxu0 %v531
    %v565 = vpop.f32.mrf.mxu0
    %v566 = vadd.f32 0.0, %v565
    %567 = vdwg.mxu0
    %v568 = vadd.f32 %v451, %v566
    %v569 = vld [vmem:[#allocation11] sm:$0x1]
    %v571 = vperm.slane %v569, 0
    %v573 = vadd.f32 %v568, %v571
    %v574 = vsel %vm453, %v573, 0.0
    %575 = vadd.xlane.f32.xlu0 %v574
    %v576 = vpop.xlane.xlu0 %575
    %v577 = vmul.f32 %v573, %v573
    %v578 = vsel %vm453, %v577, 0.0
    %579 = vadd.xlane.f32.xlu0 %v578
    %v580 = vpop.xlane.xlu0 %579
    %v581 = vmul.f32 %v576, 0.0078125
    %v582 = vmul.f32 %v580, 0.0078125
    %v583 = vmul.f32 %v581, %v581
    %v584 = vsub.f32 %v582, %v583
    %v585 = vsub.f32 %v573, %v581
    %v586 = vadd.f32 %v584, 1e-05
    %v587 = vrsqrt.pop %v586
    %v588 = vmul.f32 %v587, %v586
    %v589 = vmul.f32 %v588, %v587
    %v590 = vmul.f32 0.5, %v589
    %v591 = vsub.f32 1.5, %v590
    %v592 = vmul.f32 %v587, %v591
    %vm593 = vweird.f32 %v586
    %vm594 = vweird.f32 %v587
    %vm595 = vmor %vm593, %vm594
    %v596 = vsel %vm595, %v587, %v592
    %v597 = vmul.f32 %v585, %v596
    %s598 = scalar_lea.vmem [#allocation8], 1
    %v599 = vld [vmem:[%s598] sm:$0x1]
    %v601 = vperm.slane %v599, 0
    %v603 = vmul.f32 %v597, %v601
    %s604 = scalar_lea.vmem %s4, 1
    %v605 = vld [vmem:[%s604] sm:$0x1]
    %v607 = vperm.slane %v605, 0
    %v609 = vadd.f32 %v603, %v607
    %v610 = vmul.f32 %v609, 0.5
    %v611 = vmul.f32 %v609, 0.70710677
    %v612 = vmul.f32 %v611, %v611
    %v613 = vmin.f32 16.0, %v612
    %v614 = vmul.f32 %v613, 2.1237322e-06
    %v615 = vadd.f32 %v614, 0.00028619796
    %v616 = vmul.f32 %v613, %v615
    %v617 = vadd.f32 %v616, 0.0036580483
    %v618 = vmul.f32 %v613, %v617
    %v619 = vadd.f32 %v618, 0.05243302
    %v620 = vmul.f32 %v613, %v619
    %v621 = vadd.f32 %v620, 0.18741608
    %v622 = vmul.f32 %v613, %v621
    %v623 = vadd.f32 %v622, 1.1283791
    %v624 = vmul.f32 %v611, %v623
    %v625 = vmul.f32 %v613, 3.8918573e-05
    %v626 = vadd.f32 %v625, 0.001143296
    %v627 = vmul.f32 %v613, %v626
    %v628 = vadd.f32 %v627, 0.014752088
    %v629 = vmul.f32 %v613, %v628
    %v630 = vadd.f32 %v629, 0.112945676
    %v631 = vmul.f32 %v613, %v630
    %v632 = vadd.f32 %v631, 0.4994258
    %v633 = vmul.f32 %v613, %v632
    %v634 = vadd.f32 %v633, 1.0
    %v635 = vrcp.pop %v634
    %v636 = vmul.f32 %v634, %v635
    %v637 = vsub.f32 1.0, %v636
    %v638 = vmul.f32 %v635, %v637
    %v639 = vadd.f32 %v635, %v638
    %vm640 = vweird.f32 %v634
    %vm641 = vweird.f32 %v635
    %vm642 = vmor %vm640, %vm641
    %v643 = vsel %vm642, %v635, %v639
    %v644 = vand.u32 2147483647, %v634
    %vm645 = vcmp.eq.f32.partialorder %v644, 8.507059e+37
    %v646 = vand.u32 %v634, 2147483648
    %v647 = vor.u32 1.1754944e-38, %v646
    %v648 = vsel %vm645, %v647, %v643
    %v649 = vmul.f32 %v624, %v648
    %v650 = vmin.f32 %v649, 1.0
    %v651 = vmax.f32 %v650, -1.0
    %v652 = vadd.f32 %v651, 1.0
    %v653 = vmul.f32 %v610, %v652
    %s654 = scalar_lea.vmem [#allocation10], 128
    %v655 = vld [vmem:[%s654] sm:$0xff]
    %v656 = vld [vmem:[%s654 + $0x8] sm:$0xff]
    %v657 = vld [vmem:[%s654 + $0x10] sm:$0xff]
    %v658 = vld [vmem:[%s654 + $0x18] sm:$0xff]
    %v659 = vld [vmem:[%s654 + $0x20] sm:$0xff]
    %v660 = vld [vmem:[%s654 + $0x28] sm:$0xff]
    %v661 = vld [vmem:[%s654 + $0x30] sm:$0xff]
    %v662 = vld [vmem:[%s654 + $0x38] sm:$0xff]
    %v663 = vld [vmem:[%s654 + $0x40] sm:$0xff]
    %v664 = vld [vmem:[%s654 + $0x48] sm:$0xff]
    %v665 = vld [vmem:[%s654 + $0x50] sm:$0xff]
    %v666 = vld [vmem:[%s654 + $0x58] sm:$0xff]
    %v667 = vld [vmem:[%s654 + $0x60] sm:$0xff]
    %v668 = vld [vmem:[%s654 + $0x68] sm:$0xff]
    %v669 = vld [vmem:[%s654 + $0x70] sm:$0xff]
    %v670 = vld [vmem:[%s654 + $0x78] sm:$0xff]
    %671 = vmatpush.msra.mxu0 %v670
    %672 = vmatpush.msra.mxu0 %v669
    %673 = vmatpush.msra.mxu0 %v668
    %674 = vmatpush.msra.mxu0 %v667
    %675 = vmatpush.msra.mxu0 %v666
    %676 = vmatpush.msra.mxu0 %v665
    %677 = vmatpush.msra.mxu0 %v664
    %678 = vmatpush.msra.mxu0 %v663
    %679 = vmatpush.msra.mxu0 %v662
    %680 = vmatpush.msra.mxu0 %v661
    %681 = vmatpush.msra.mxu0 %v660
    %682 = vmatpush.msra.mxu0 %v659
    %683 = vmatpush.msra.mxu0 %v658
    %684 = vmatpush.msra.mxu0 %v657
    %685 = vmatpush.msra.mxu0 %v656
    %686 = vmatpush.msra.mxu0 %v655
    %687 = vmatmul.f32.gmra.mxu0 %v653
    %v688 = vpop.f32.mrf.mxu0
    %v689 = vadd.f32 0.0, %v688
    %690 = vdwg.mxu0
    %v691 = vadd.f32 %v573, %v689
    %s692 = scalar_lea.vmem [#allocation11], 1
    %v693 = vld [vmem:[%s692] sm:$0x1]
    %v695 = vperm.slane %v693, 0
    %v697 = vadd.f32 %v691, %v695
    %v698 = vsel %vm453, %v697, 0.0
    %699 = vadd.xlane.f32.xlu0 %v698
    %v700 = vpop.xlane.xlu0 %699
    %v701 = vmul.f32 %v697, %v697
    %v702 = vsel %vm453, %v701, 0.0
    %703 = vadd.xlane.f32.xlu0 %v702
    %v704 = vpop.xlane.xlu0 %703
    %v705 = vmul.f32 %v700, 0.0078125
    %v706 = vmul.f32 %v704, 0.0078125
    %v707 = vmul.f32 %v705, %v705
    %v708 = vsub.f32 %v706, %v707
    %v709 = vsub.f32 %v697, %v705
    %v710 = vadd.f32 %v708, 1e-05
    %v711 = vrsqrt.pop %v710
    %v712 = vmul.f32 %v711, %v710
    %v713 = vmul.f32 %v712, %v711
    %v714 = vmul.f32 0.5, %v713
    %v715 = vsub.f32 1.5, %v714
    %v716 = vmul.f32 %v711, %v715
    %vm717 = vweird.f32 %v710
    %vm718 = vweird.f32 %v711
    %vm719 = vmor %vm717, %vm718
    %v720 = vsel %vm719, %v711, %v716
    %v721 = vmul.f32 %v709, %v720
    %s722 = scalar_lea.vmem [#allocation8], 2
    %v723 = vld [vmem:[%s722] sm:$0x1]
    %v725 = vperm.slane %v723, 0
    %v727 = vmul.f32 %v721, %v725
    %s728 = scalar_lea.vmem %s4, 2
    %v729 = vld [vmem:[%s728] sm:$0x1]
    %v731 = vperm.slane %v729, 0
    %v733 = vadd.f32 %v727, %v731
    %v734 = vmul.f32 %v733, 0.5
    %v735 = vmul.f32 %v733, 0.70710677
    %v736 = vmul.f32 %v735, %v735
    %v737 = vmin.f32 16.0, %v736
    %v738 = vmul.f32 %v737, 2.1237322e-06
    %v739 = vadd.f32 %v738, 0.00028619796
    %v740 = vmul.f32 %v737, %v739
    %v741 = vadd.f32 %v740, 0.0036580483
    %v742 = vmul.f32 %v737, %v741
    %v743 = vadd.f32 %v742, 0.05243302
    %v744 = vmul.f32 %v737, %v743
    %v745 = vadd.f32 %v744, 0.18741608
    %v746 = vmul.f32 %v737, %v745
    %v747 = vadd.f32 %v746, 1.1283791
    %v748 = vmul.f32 %v735, %v747
    %v749 = vmul.f32 %v737, 3.8918573e-05
    %v750 = vadd.f32 %v749, 0.001143296
    %v751 = vmul.f32 %v737, %v750
    %v752 = vadd.f32 %v751, 0.014752088
    %v753 = vmul.f32 %v737, %v752
    %v754 = vadd.f32 %v753, 0.112945676
    %v755 = vmul.f32 %v737, %v754
    %v756 = vadd.f32 %v755, 0.4994258
    %v757 = vmul.f32 %v737, %v756
    %v758 = vadd.f32 %v757, 1.0
    %v759 = vrcp.pop %v758
    %v760 = vmul.f32 %v758, %v759
    %v761 = vsub.f32 1.0, %v760
    %v762 = vmul.f32 %v759, %v761
    %v763 = vadd.f32 %v759, %v762
    %vm764 = vweird.f32 %v758
    %vm765 = vweird.f32 %v759
    %vm766 = vmor %vm764, %vm765
    %v767 = vsel %vm766, %v759, %v763
    %v768 = vand.u32 2147483647, %v758
    %vm769 = vcmp.eq.f32.partialorder %v768, 8.507059e+37
    %v770 = vand.u32 %v758, 2147483648
    %v771 = vor.u32 1.1754944e-38, %v770
    %v772 = vsel %vm769, %v771, %v767
    %v773 = vmul.f32 %v748, %v772
    %v774 = vmin.f32 %v773, 1.0
    %v775 = vmax.f32 %v774, -1.0
    %v776 = vadd.f32 %v775, 1.0
    %v777 = vmul.f32 %v734, %v776
    %s778 = scalar_lea.vmem [#allocation10], 256
    %v779 = vld [vmem:[%s778] sm:$0xff]
    %v780 = vld [vmem:[%s778 + $0x8] sm:$0xff]
    %v781 = vld [vmem:[%s778 + $0x10] sm:$0xff]
    %v782 = vld [vmem:[%s778 + $0x18] sm:$0xff]
    %v783 = vld [vmem:[%s778 + $0x20] sm:$0xff]
    %v784 = vld [vmem:[%s778 + $0x28] sm:$0xff]
    %v785 = vld [vmem:[%s778 + $0x30] sm:$0xff]
    %v786 = vld [vmem:[%s778 + $0x38] sm:$0xff]
    %v787 = vld [vmem:[%s778 + $0x40] sm:$0xff]
    %v788 = vld [vmem:[%s778 + $0x48] sm:$0xff]
    %v789 = vld [vmem:[%s778 + $0x50] sm:$0xff]
    %v790 = vld [vmem:[%s778 + $0x58] sm:$0xff]
    %v791 = vld [vmem:[%s778 + $0x60] sm:$0xff]
    %v792 = vld [vmem:[%s778 + $0x68] sm:$0xff]
    %v793 = vld [vmem:[%s778 + $0x70] sm:$0xff]
    %v794 = vld [vmem:[%s778 + $0x78] sm:$0xff]
    %795 = vmatpush.msra.mxu0 %v794
    %796 = vmatpush.msra.mxu0 %v793
    %797 = vmatpush.msra.mxu0 %v792
    %798 = vmatpush.msra.mxu0 %v791
    %799 = vmatpush.msra.mxu0 %v790
    %800 = vmatpush.msra.mxu0 %v789
    %801 = vmatpush.msra.mxu0 %v788
    %802 = vmatpush.msra.mxu0 %v787
    %803 = vmatpush.msra.mxu0 %v786
    %804 = vmatpush.msra.mxu0 %v785
    %805 = vmatpush.msra.mxu0 %v784
    %806 = vmatpush.msra.mxu0 %v783
    %807 = vmatpush.msra.mxu0 %v782
    %808 = vmatpush.msra.mxu0 %v781
    %809 = vmatpush.msra.mxu0 %v780
    %810 = vmatpush.msra.mxu0 %v779
    %811 = vmatmul.f32.gmra.mxu0 %v777
    %v812 = vpop.f32.mrf.mxu0
    %v813 = vadd.f32 0.0, %v812
    %814 = vdwg.mxu0
    %v815 = vadd.f32 %v697, %v813
    %s816 = scalar_lea.vmem [#allocation11], 2
    %v817 = vld [vmem:[%s816] sm:$0x1]
    %v819 = vperm.slane %v817, 0
    %v821 = vadd.f32 %v815, %v819
    %v822 = vmul.f32 %v821, 0.5
    %v823 = vmul.f32 %v821, 0.70710677
    %v824 = vmul.f32 %v823, %v823
    %v825 = vmin.f32 16.0, %v824
    %v826 = vmul.f32 %v825, 2.1237322e-06
    %v827 = vadd.f32 %v826, 0.00028619796
    %v828 = vmul.f32 %v825, %v827
    %v829 = vadd.f32 %v828, 0.0036580483
    %v830 = vmul.f32 %v825, %v829
    %v831 = vadd.f32 %v830, 0.05243302
    %v832 = vmul.f32 %v825, %v831
    %v833 = vadd.f32 %v832, 0.18741608
    %v834 = vmul.f32 %v825, %v833
    %v835 = vadd.f32 %v834, 1.1283791
    %v836 = vmul.f32 %v823, %v835
    %v837 = vmul.f32 %v825, 3.8918573e-05
    %v838 = vadd.f32 %v837, 0.001143296
    %v839 = vmul.f32 %v825, %v838
    %v840 = vadd.f32 %v839, 0.014752088
    %v841 = vmul.f32 %v825, %v840
    %v842 = vadd.f32 %v841, 0.112945676
    %v843 = vmul.f32 %v825, %v842
    %v844 = vadd.f32 %v843, 0.4994258
    %v845 = vmul.f32 %v825, %v844
    %v846 = vadd.f32 %v845, 1.0
    %v847 = vrcp.pop %v846
    %v848 = vmul.f32 %v846, %v847
    %v849 = vsub.f32 1.0, %v848
    %v850 = vmul.f32 %v847, %v849
    %v851 = vadd.f32 %v847, %v850
    %vm852 = vweird.f32 %v846
    %vm853 = vweird.f32 %v847
    %vm854 = vmor %vm852, %vm853
    %v855 = vsel %vm854, %v847, %v851
    %v856 = vand.u32 2147483647, %v846
    %vm857 = vcmp.eq.f32.partialorder %v856, 8.507059e+37
    %v858 = vand.u32 %v846, 2147483648
    %v859 = vor.u32 1.1754944e-38, %v858
    %v860 = vsel %vm857, %v859, %v855
    %v861 = vmul.f32 %v836, %v860
    %v862 = vmin.f32 %v861, 1.0
    %v863 = vmax.f32 %v862, -1.0
    %v864 = vadd.f32 %v863, 1.0
    %v865 = vmul.f32 %v822, %v864
    %v866 = vld [vmem:[#allocation13] sm:$0xff]
    %v867 = vld [vmem:[#allocation13 + $0x8] sm:$0xff]
    %v868 = vld [vmem:[#allocation13 + $0x10] sm:$0xff]
    %v869 = vld [vmem:[#allocation13 + $0x18] sm:$0xff]
    %v870 = vld [vmem:[#allocation13 + $0x20] sm:$0xff]
    %v871 = vld [vmem:[#allocation13 + $0x28] sm:$0xff]
    %v872 = vld [vmem:[#allocation13 + $0x30] sm:$0xff]
    %v873 = vld [vmem:[#allocation13 + $0x38] sm:$0xff]
    %v874 = vld [vmem:[#allocation13 + $0x40] sm:$0xff]
    %v875 = vld [vmem:[#allocation13 + $0x48] sm:$0xff]
    %v876 = vld [vmem:[#allocation13 + $0x50] sm:$0xff]
    %v877 = vld [vmem:[#allocation13 + $0x58] sm:$0xff]
    %v878 = vld [vmem:[#allocation13 + $0x60] sm:$0xff]
    %v879 = vld [vmem:[#allocation13 + $0x68] sm:$0xff]
    %v880 = vld [vmem:[#allocation13 + $0x70] sm:$0xff]
    %v881 = vld [vmem:[#allocation13 + $0x78] sm:$0xff]
    %v882 = vld [vmem:[%s8] sm:$0x1]
    %v884 = vperm.slane %v882, 0
    %886 = vmatpush.msra.mxu0 %v881
    %887 = vmatpush.msra.mxu0 %v880
    %888 = vmatpush.msra.mxu0 %v879
    %889 = vmatpush.msra.mxu0 %v878
    %890 = vmatpush.msra.mxu0 %v877
    %891 = vmatpush.msra.mxu0 %v876
    %892 = vmatpush.msra.mxu0 %v875
    %893 = vmatpush.msra.mxu0 %v874
    %894 = vmatpush.msra.mxu0 %v873
    %895 = vmatpush.msra.mxu0 %v872
    %896 = vmatpush.msra.mxu0 %v871
    %897 = vmatpush.msra.mxu0 %v870
    %898 = vmatpush.msra.mxu0 %v869
    %899 = vmatpush.msra.mxu0 %v868
    %900 = vmatpush.msra.mxu0 %v867
    %901 = vmatpush.msra.mxu0 %v866
    %902 = vmatmul.f32.gmra.mxu0 %v865
    %v903 = vpop.f32.mrf.mxu0
    %v904 = vadd.f32 %v884, %v903
    %905 = vdwg.mxu0
    %906 = vst [vmem:[#allocation14] sm:$0x3] %v904
    // Predicated region
    $region66: #{tpu_custom_call.1} parent=1 // pred_check
      _
    $region67: #{tpu_custom_call.1} parent=1 // pred_check_branch
      %908 = sbr.rel (0) target = $region69
    $region68: #{tpu_custom_call.1} parent=1 // pred_region
      %910 = vsyncadd [#allocation4], 0
      %s912 = sshll.u32 [#allocation14], 4
      %s913 = int_to_ptr.vmem [resolvable:$true] %s912
      %s914 = sshll.u32 %s9, 4
      %s915 = int_to_ptr.hbm [resolvable:$true] %s914
      %917 = dma.vmem_to_hbm [thread:$0]  %s913, 32, %s915, [#allocation4]
    $region69: #{tpu_custom_call.1} parent=1 // pred_fallthru
      _
    // Predicated region
    $region70: #{tpu_custom_call.1} parent=1 // pred_check
      _
    $region71: #{tpu_custom_call.1} parent=1 // pred_check_branch
      %919 = sbr.rel (0) target = $region73
    $region72: #{tpu_custom_call.1} parent=1 // pred_region
      %921 = dma.done [#allocation4], 32
    $region73: #{tpu_custom_call.1} parent=1 // pred_fallthru
      _
    %922 = vsyncpa [#allocation3], 1
    %923 = vsyncpa [#allocation6], 1
    %924 = vsyncpa [#allocation9], 1
    %925 = vsyncpa [#allocation12], 1
    %926 = vsyncpa [#allocation4], 1

</llo_original>
